<compile_context>
chip_gen: v7x
topology: tpu7x:2x2x1
jax: 0.10.0
libtpu: 0.0.40
codegen_flags: <defaults>
</compile_context>

<pallas_src>
import jax
import jax.numpy as jnp
from jax.experimental import pallas as pl
from jax.experimental.pallas import tpu as pltpu

_LANE = 128
_MiB = 1024 * 1024


# ---------------------------------------------------------------------------
# Kernels
# ---------------------------------------------------------------------------
def _attention_kernel_vpu(x_ref, w_ref, b_ref, o_ref):
    # x_ref: (TN, C, TL) VMEM tile (input dtype)
    # w_ref: (C, 1)      VMEM conv weight (input dtype), channel on sublanes
    # b_ref: (1,)        SMEM f32 bias
    # o_ref: (TN, C, TL) VMEM output tile (input dtype)
    x = x_ref[...]
    w_col = w_ref[...]                                        # (C, 1)
    # Channel reduction on the VPU/XLU: multiply + sublane sum (C is small).
    score = jnp.sum(x * w_col[None, :, :], axis=1, keepdims=True)   # (TN, 1, TL)
    attn = jax.nn.sigmoid(score.astype(jnp.float32) + b_ref[0])     # f32
    # Gate in the input dtype; attn broadcasts across the channel (sublane) axis.
    o_ref[...] = x * attn.astype(x.dtype)


def _attention_kernel_mxu(x_ref, w_ref, b_ref, o_ref):
    # x_ref: (1, C, TL) VMEM tile; w_ref: (1, C); b_ref: (1,) SMEM f32.
    x2d = x_ref[0]                                            # (C, TL)
    # Wide-channel reduction on the MXU with f32 accumulation.
    score = jnp.dot(w_ref[...], x2d, preferred_element_type=jnp.float32)  # (1, TL)
    attn = jax.nn.sigmoid(score + b_ref[0])
    o_ref[0] = x2d * attn.astype(x2d.dtype)


# ---------------------------------------------------------------------------
# Wrapper
# ---------------------------------------------------------------------------
def _vmem_limit_bytes():
    """Generation-aware scoped-VMEM limit with headroom (never the full chip)."""
    try:
        cap = int(pltpu.get_tpu_info().vmem_capacity_bytes)
    except Exception:
        cap = 64 * _MiB          # conservative (v7x-sized) fallback
    # ~48 MiB on v7x (64 MiB physical), ~100 MiB on v5e/v6e (128 MiB physical).
    return int(max(32 * _MiB, min(cap - 16 * _MiB, 100 * _MiB)))


def attention_forward(x, weight, bias, *, max_tl=None, max_tn=None):
    """x: (N, C, L); weight: (1, C, 1) Conv1d weight; bias: (1,) Conv1d bias."""
    N, C, L = x.shape
    itemsize = jnp.dtype(x.dtype).itemsize

    vmem_limit = _vmem_limit_bytes()
    # x tile + out tile, each double-buffered, plus margin -> per-block budget.
    block_budget = vmem_limit // 6

    # VMEM footprint accounting: small C pads up to the sublane pack.
    sublane_pack = 8 * max(1, 4 // itemsize)            # 8 f32 / 16 bf16 / 32 int8
    c_pad = ((C + sublane_pack - 1) // sublane_pack) * sublane_pack

    # L tile: multiple of 128 (or the whole, un-padded L when L <= 128).
    if L <= _LANE:
        TL, tl_lanes = L, _LANE
    else:
        col_bytes = c_pad * _LANE * itemsize
        blocks = max(1, min(pl.cdiv(L, _LANE), block_budget // col_bytes))
        TL = blocks * _LANE
        tl_lanes = TL
    if max_tl is not None:                               # test / tuning override
        cap = max_tl if L <= _LANE else max(_LANE, (max_tl // _LANE) * _LANE)
        TL = max(1, min(TL, cap))
        tl_lanes = max(TL, _LANE)

    use_mxu = C >= 128
    if use_mxu:
        # Wide channels: block is already large with TN=1; keep MXU dot path.
        TN = 1
        w_arg = weight.reshape(1, C).astype(x.dtype)     # NB: bf16 inputs lose
        kernel = _attention_kernel_mxu                   # weight precision (ok).
    else:
        # Narrow channels: fold batch into the block so each grid step is big.
        block1 = c_pad * tl_lanes * itemsize
        TN = max(1, min(N, block_budget // max(block1, 1)))
        if max_tn is not None:
            TN = max(1, min(TN, max_tn))
        # Keep N-blocks exact (only the L axis relies on ragged-tile masking).
        while TN > 1 and N % TN:
            TN -= 1
        w_arg = weight.reshape(C, 1).astype(x.dtype)
        kernel = _attention_kernel_vpu

    b1d = bias.reshape(1).astype(jnp.float32)

    grid = (pl.cdiv(N, TN), pl.cdiv(L, TL))

    cost = pl.CostEstimate(
        flops=int(3 * N * C * L),
        transcendentals=int(N * L),
        bytes_accessed=int(2 * N * C * L * itemsize),
    )

    return pl.pallas_call(
        kernel,
        out_shape=jax.ShapeDtypeStruct((N, C, L), x.dtype),
        grid_spec=pltpu.PrefetchScalarGridSpec(
            num_scalar_prefetch=0,
            grid=grid,
            in_specs=[
                pl.BlockSpec((TN, C, TL), lambda n, l: (n, 0, l)),   # x tile
                pl.BlockSpec(w_arg.shape, lambda n, l: (0, 0)),      # weight (tiny)
                pl.BlockSpec(memory_space=pltpu.MemorySpace.SMEM),   # bias scalar
            ],
            out_specs=pl.BlockSpec((TN, C, TL), lambda n, l: (n, 0, l)),
        ),
        compiler_params=pltpu.CompilerParams(
            dimension_semantics=("parallel", "parallel"),
            vmem_limit_bytes=vmem_limit,
        ),
        cost_estimate=cost,
    )(x, w_arg, b1d)


# ---------------------------------------------------------------------------
# Reference + test harness
# ---------------------------------------------------------------------------
def attention_reference(x, weight, bias):
    # Pure-JAX reference mirroring nn.Conv1d(C, 1, 1) + Sigmoid + elementwise mul
    w = weight.reshape(1, -1, 1)                         # (1, C, 1)
    score = jnp.sum(x * w, axis=1, keepdims=True) + bias.reshape(1, 1, 1)
    return x * jax.nn.sigmoid(score)


def _make_inputs(key, N, C, L, dtype=jnp.float32):
    kx, kw, kb = jax.random.split(key, 3)
    x = jax.random.normal(kx, (N, C, L), dtype=dtype)
    bound = 1.0 / jnp.sqrt(jnp.float32(C))
    weight = jax.random.uniform(kw, (1, C, 1), minval=-bound, maxval=bound,
                                dtype=jnp.float32)
    bias = jax.random.uniform(kb, (1,), minval=-bound, maxval=bound,
                              dtype=jnp.float32)
    return x, weight, bias


if __name__ == "__main__":
    key = jax.random.PRNGKey(0)
    k1, k2, k3 = jax.random.split(key, 3)

    # Test 1: primary small shape (N, C, L) = (2, 4, 16) — VPU path, whole
    # problem in a single (TN=2, C, L) block, no padding of L.
    N, C, L = 2, 4, 16
    x, w, b = _make_inputs(k1, N, C, L)
    out = jax.block_until_ready(attention_forward(x, w, b))
    ref = attention_reference(x, w, b)
    assert out.shape == (N, C, L)
    assert jnp.allclose(out, ref, atol=1e-5, rtol=1e-5), "mismatch (small)"

    # Test 2: L not a multiple of 128 with multiple L tiles and multiple N tiles
    # (exercises the un-padded ragged trailing-L tile: padded reads, masked stores).
    N2, C2, L2 = 4, 8, 200
    x2, w2, b2 = _make_inputs(k2, N2, C2, L2)
    out2 = jax.block_until_ready(attention_forward(x2, w2, b2, max_tl=128, max_tn=3))
    ref2 = attention_reference(x2, w2, b2)
    assert out2.shape == (N2, C2, L2)
    assert jnp.allclose(out2, ref2, atol=1e-5, rtol=1e-5), "mismatch (ragged/tiled)"

    # Test 3: wide-channel path (C >= 128 -> MXU dot, TN forced to 1).
    # Looser tolerance: default-precision f32 matmul on the MXU vs exact f32 sum.
    N3, C3, L3 = 2, 256, 64
    x3, w3, b3 = _make_inputs(k3, N3, C3, L3)
    out3 = jax.block_until_ready(attention_forward(x3, w3, b3))
    ref3 = attention_reference(x3, w3, b3)
    assert out3.shape == (N3, C3, L3)
    assert jnp.allclose(out3, ref3, atol=2e-2, rtol=2e-2), "mismatch (wide C)"

    print("KERNEL_OK")
</pallas_src>

<mosaic_0001>
module attributes {stable_mosaic.version = 11 : i64} {
  func.func @_attention_kernel_vpu(%arg0: i32, %arg1: i32, %arg2: memref<2x4x16xf32, #tpu.memory_space<vmem>>, %arg3: memref<4x1xf32, #tpu.memory_space<vmem>>, %arg4: memref<1xf32, #tpu.memory_space<smem>>, %arg5: memref<2x4x16xf32, #tpu.memory_space<vmem>>) attributes {dimension_semantics = [#tpu.dimension_semantics<parallel>, #tpu.dimension_semantics<parallel>], iteration_bounds = array<i64: 1, 1>, scalar_prefetch = 0 : i64, scratch_operands = 0 : i64, tpu.core_type = #tpu.core_type<tc>, window_params = [{transform_indices = @transform_0, window_bounds = array<i64: 2, 4, 16>}, {pipeline_mode = #tpu.pipeline_mode<synchronous>, transform_indices = @transform_1, window_bounds = array<i64: 4, 1>}, {transform_indices = @transform_2, window_bounds = array<i64: 1>}, {transform_indices = @transform_3, window_bounds = array<i64: 2, 4, 16>}]} {
    %c0 = arith.constant 0 : index
    %c0_0 = arith.constant 0 : index
    %c0_1 = arith.constant 0 : index
    %0 = vector.load %arg2[%c0, %c0_0, %c0_1] : memref<2x4x16xf32, #tpu.memory_space<vmem>>, vector<2x4x16xf32>
    %c0_2 = arith.constant 0 : index
    %c0_3 = arith.constant 0 : index
    %1 = vector.load %arg3[%c0_2, %c0_3] : memref<4x1xf32, #tpu.memory_space<vmem>>, vector<4x1xf32>
    %2 = vector.shape_cast %1 : vector<4x1xf32> to vector<1x4x1xf32>
    %3 = vector.broadcast %2 : vector<1x4x1xf32> to vector<2x4x16xf32>
    %4 = arith.mulf %0, %3 : vector<2x4x16xf32>
    %cst = arith.constant dense<0.000000e+00> : vector<2x16xf32>
    %5 = vector.multi_reduction <add>, %4, %cst [1] : vector<2x4x16xf32> to vector<2x16xf32>
    %6 = vector.shape_cast %5 : vector<2x16xf32> to vector<2x1x16xf32>
    %c0_4 = arith.constant 0 : index
    %7 = memref.load %arg4[%c0_4] : memref<1xf32, #tpu.memory_space<smem>>
    %8 = vector.broadcast %7 : f32 to vector<2x1x16xf32>
    %9 = arith.addf %6, %8 : vector<2x1x16xf32>
    %10 = arith.negf %9 : vector<2x1x16xf32>
    %11 = math.exp %10 : vector<2x1x16xf32>
    %cst_5 = arith.constant 1.000000e+00 : f32
    %12 = vector.broadcast %cst_5 : f32 to vector<2x1x16xf32>
    %13 = arith.addf %12, %11 : vector<2x1x16xf32>
    %14 = arith.divf %12, %13 : vector<2x1x16xf32>
    %15 = vector.broadcast %14 : vector<2x1x16xf32> to vector<2x4x16xf32>
    %16 = arith.mulf %0, %15 : vector<2x4x16xf32>
    %c0_6 = arith.constant 0 : index
    %c0_7 = arith.constant 0 : index
    %c0_8 = arith.constant 0 : index
    %17 = vector.load %arg5[%c0_6, %c0_7, %c0_8] : memref<2x4x16xf32, #tpu.memory_space<vmem>>, vector<2x4x16xf32>
    tpu.vector_store %arg5[%c0_6, %c0_7, %c0_8], %16 {strides = array<i32>} : memref<2x4x16xf32, #tpu.memory_space<vmem>>, vector<2x4x16xf32>,
    return
  }
  func.func @transform_0(%arg0: i32, %arg1: i32) -> (i32, i32, i32) {
    %c0_i32 = arith.constant 0 : i32
    %c0_i32_0 = arith.constant 0 : i32
    return %arg0, %c0_i32, %arg1 : i32, i32, i32
  }
  func.func @transform_1(%arg0: i32, %arg1: i32) -> (i32, i32) {
    %c0_i32 = arith.constant 0 : i32
    %c0_i32_0 = arith.constant 0 : i32
    %c0_i32_1 = arith.constant 0 : i32
    return %c0_i32, %c0_i32_0 : i32, i32
  }
  func.func @transform_2(%arg0: i32, %arg1: i32) -> i32 {
    %c0_i32 = arith.constant 0 : i32
    %c0_i32_0 = arith.constant 0 : i32
    return %c0_i32 : i32
  }
  func.func @transform_3(%arg0: i32, %arg1: i32) -> (i32, i32, i32) {
    %c0_i32 = arith.constant 0 : i32
    %c0_i32_0 = arith.constant 0 : i32
    return %arg0, %c0_i32, %arg1 : i32, i32, i32
  }
}

</mosaic_0001>

<llo_original>
// kernel: tpu_custom_call.1
$region0: #{tpu_custom_call.1}
  #allocation0 [shape = 'u32[]', space=smem, size = 0x4, offset = 0x4, fixed_abs, tag = 'smem constant byte address 0x4 - core index']
  #allocation1 [shape = 'u32[144,128]{1,0:T(1,128)}', space=vmem, size = 0x12000, scoped, tag = 'internal scratch']
  #allocation2 [shape = 'f32[1]{0:T(128)S(6)}', space=smem, size = 0x200, scoped, tag = 'scoped memory for tpu_custom_call.1']
  %s0 = inlined_call_operand.vmem [shape: f32[2,4,16], index: 0, kind: input, shape index: {}]
  %s1 = inlined_call_operand.vmem [shape: f32[4,1], index: 1, kind: input, shape index: {}]
  %s2 = inlined_call_operand.<no memory space> [shape: f32[1], index: 2, kind: input, shape index: {}]
  %s3 = inlined_call_operand.hbm [shape: f32[2,4,16], index: 3, kind: output, shape index: {}]
  %s4 = sld [smem:[#allocation0]]
  $region22: #{tpu_custom_call.1} parent=0
    _
  %s6 = ssub.s32 1, %s4
  %s7 = scalar_select 0, %s6, %s4
  %8 = sst [smem:[#allocation2]] %s2
  $region1: #{tpu_custom_call.1} parent=0
    #allocation3 [shape = 'u8[4096]{0}', space=vmem, size = 0x1000, scoped, tag = 'output window, operand 0, single buffered']
    #allocation4 [shape = 's32[1]{0}', space=sflag, size = 0x4, scoped, tag = 'scoped memory for tpu_custom_call.1']
    %9 = vsyncpa [#allocation4], 0
    // Predicated region
    $region2: #{tpu_custom_call.1} parent=1 // pred_check
      _
    $region3: #{tpu_custom_call.1} parent=1 // pred_check_branch
      %11 = sbr.rel (0) target = $region5
    $region4: #{tpu_custom_call.1} parent=1 // pred_region
      _
    $region5: #{tpu_custom_call.1} parent=1 // pred_fallthru
      _
    // Predicated region
    $region6: #{tpu_custom_call.1} parent=1 // pred_check
      _
    $region7: #{tpu_custom_call.1} parent=1 // pred_check_branch
      %13 = sbr.rel (0) target = $region9
    $region8: #{tpu_custom_call.1} parent=1 // pred_region
      _
    $region9: #{tpu_custom_call.1} parent=1 // pred_fallthru
      _
    // Predicated region
    $region10: #{tpu_custom_call.1} parent=1 // pred_check
      _
    $region11: #{tpu_custom_call.1} parent=1 // pred_check_branch
      %15 = sbr.rel (0) target = $region13
    $region12: #{tpu_custom_call.1} parent=1 // pred_region
      _
    $region13: #{tpu_custom_call.1} parent=1 // pred_fallthru
      _
    %v16 = vld [vmem:[%s0] sm:$0xf]
    %v17 = vld [vmem:[%s0 + $0x4] sm:$0xf]
    %v18 = vld [vmem:[%s1] sm:$0xf]
    %20 = vset.pattern.permute.xlu0 0
    %21 = vperm.xlu0 %20, %v18
    %v22 = vpop.permute.xlu0 %21
    %v24 = vmul.f32 %v16, %v22
    %v25 = vmul.f32 %v17, %v22
    %vm26 = vcmask 125952
    %v27 = vsel %vm26, %v24, 0.0
    %v28 = vrot.slane %v27, 4
    %v29 = vadd.f32 %v27, %v28
    %v30 = vrot.slane %v29, 2
    %v31 = vadd.f32 %v29, %v30
    %v32 = vrot.slane %v31, 1
    %v33 = vadd.f32 %v31, %v32
    %v34 = vsel %vm26, %v25, 0.0
    %v35 = vrot.slane %v34, 4
    %v36 = vadd.f32 %v34, %v35
    %v37 = vrot.slane %v36, 2
    %v38 = vadd.f32 %v36, %v37
    %v39 = vrot.slane %v38, 1
    %v40 = vadd.f32 %v38, %v39
    %s41 = sld [smem:[#allocation2]]
    %v42 = vstv %s41
    %v43 = vadd.f32 %v33, %v42
    %v44 = vadd.f32 %v40, %v42
    %v45 = vxor.u32 %v43, 2147483648
    %v46 = vxor.u32 %v44, 2147483648
    %v47 = vmul.f32 %v45, 1.442695
    %v48 = vpow.pop %v47
    %v49 = vmul.f32 %v46, 1.442695
    %v50 = vpow.pop %v49
    %v51 = vadd.f32 %v48, 1.0
    %v52 = vadd.f32 %v50, 1.0
    %v53 = vrcp.pop %v51
    %v54 = vmul.f32 1.0, %v53
    %v55 = vrcp.pop %v52
    %v56 = vmul.f32 1.0, %v55
    %v57 = vmul.f32 %v16, %v54
    %v58 = vmul.f32 %v17, %v56
    %59 = vst.msk [vmem:[#allocation3] sm:$0xf] %vm26, %v57
    %60 = vst.msk [vmem:[#allocation3 + $0x4] sm:$0xf] %vm26, %v58
    // Predicated region
    $region14: #{tpu_custom_call.1} parent=1 // pred_check
      _
    $region15: #{tpu_custom_call.1} parent=1 // pred_check_branch
      %62 = sbr.rel (0) target = $region17
    $region16: #{tpu_custom_call.1} parent=1 // pred_region
      %s64 = ssub.s32 128, 128
      %65 = vsyncadd [#allocation4], %s64
      %s66 = sshll.u32 [#allocation3], 4
      %s67 = int_to_ptr.vmem [resolvable:$true] %s66
      %72 = dma.vmem_to_hbm [thread:$0]  %s67, 128, %s3, [#allocation4], 64, 64, 4
    $region17: #{tpu_custom_call.1} parent=1 // pred_fallthru
      _
    // Predicated region
    $region18: #{tpu_custom_call.1} parent=1 // pred_check
      _
    $region19: #{tpu_custom_call.1} parent=1 // pred_check_branch
      %74 = sbr.rel (0) target = $region21
    $region20: #{tpu_custom_call.1} parent=1 // pred_region
      %75 = dma.done [#allocation4], 128
    $region21: #{tpu_custom_call.1} parent=1 // pred_fallthru
      _
    %76 = vsyncpa [#allocation4], 1

</llo_original>
